<compile_context>
chip_gen: v6e
topology: v6e:2x2x1
jax: 0.10.0
libtpu: 0.0.40
codegen_flags: <defaults>
</compile_context>

<pallas_src>
import jax
import jax.numpy as jnp
from jax import lax
from jax.experimental import pallas as pl
from jax.experimental.pallas import tpu as pltpu


# --------------------------------------------------------------------------
# Kernel
# --------------------------------------------------------------------------
def _make_kernel(heads, Lq, Lk, compute_dtype):
    """One grid step == one batch element, heads stacked on sublanes."""

    def kernel(q_ref, k_ref, v_ref,
               wq_ref, bq_ref, wk_ref, bk_ref, wvo_ref, bvo_ref, bo_ref,
               mask_ref, o_ref):
        f32 = jnp.float32

        # ---- projections (operands already in compute_dtype, f32 accumulate) ----
        # q: (heads*Lq, hd)   scale already folded into wq_aug / bq_stk
        q = jnp.dot(q_ref[...], wq_ref[...], preferred_element_type=f32) + bq_ref[...]
        # k: (heads*Lk, hd)
        k = jnp.dot(k_ref[...], wk_ref[...], preferred_element_type=f32) + bk_ref[...]
        # vo: (heads*Lk, Dq)  -- V-projection fused with its Wo row-slice
        vo = jnp.dot(v_ref[...], wvo_ref[...], preferred_element_type=f32) + bvo_ref[...]

        # ---- scores: contract last dims directly (no .T / no XLU transpose) ----
        s = lax.dot_general(q.astype(compute_dtype), k.astype(compute_dtype),
                            dimension_numbers=(((1,), (1,)), ((), ())),
                            preferred_element_type=f32)          # (heads*Lq, heads*Lk)

        # kill cross-head blocks, then numerically-stable softmax (f32 VPU/EUP)
        s = s + mask_ref[...]
        s = s - jnp.max(s, axis=-1, keepdims=True)
        p = jnp.exp(s)
        p = p * pl.reciprocal(jnp.sum(p, axis=-1, keepdims=True), approx=True)
        # TODO(synk): training-mode dropout would mask p here; eval mode == identity.

        # ---- PV (already carries the output projection) ----
        ctx = jnp.dot(p.astype(compute_dtype), vo.astype(compute_dtype),
                      preferred_element_type=f32)                # (heads*Lq, Dq)

        # ---- reduce head contributions (sublane-aligned static slices) ----
        acc = ctx[0:Lq, :]
        for h in range(1, heads):
            acc = acc + ctx[h * Lq:(h + 1) * Lq, :]

        # single store of the whole per-batch output block
        o_ref[...] = (acc + bo_ref[...]).astype(o_ref.dtype)

    return kernel


# --------------------------------------------------------------------------
# One-time operand preparation (param-init time, not per call)
# --------------------------------------------------------------------------
def prepare_cross_attention_constants(params, heads, Lq, Lk,
                                      compute_dtype=jnp.bfloat16):
    """Builds stacked weights / biases / block-diagonal mask once."""
    wq, bq, wk, bk, wv, bv, wo, bo = params
    Dq, Dkv = wq.shape
    hd = Dkv // heads
    scale = hd ** (-0.5)

    def stack_cols(w, s=1.0):
        # (Din, heads*hd) -> (heads*Din, hd): row block h = w[:, h*hd:(h+1)*hd]
        din = w.shape[0]
        return (w.reshape(din, heads, hd).transpose(1, 0, 2)
                 .reshape(heads * din, hd) * s)

    wq_aug = stack_cols(wq, scale).astype(compute_dtype)           # (heads*Dq,  hd)
    wk_aug = stack_cols(wk).astype(compute_dtype)                  # (heads*Dkv, hd)

    wo_r = wo.reshape(heads, hd, Dq)
    # Fused per-head V->out weight: block h = Wv[:, h] @ Wo[h, :]
    wvo_aug = (jnp.einsum("dhe,heo->hdo", wv.reshape(Dkv, heads, hd), wo_r)
                 .reshape(heads * Dkv, Dq).astype(compute_dtype))  # (heads*Dkv, Dq)

    # Biases in stacked (head, row) layout; kept f32 (added post-accumulation).
    bq_stk = jnp.repeat((bq * scale).reshape(heads, hd), Lq, axis=0).astype(jnp.float32)
    bk_stk = jnp.repeat(bk.reshape(heads, hd), Lk, axis=0).astype(jnp.float32)
    bvo_stk = jnp.repeat(jnp.einsum("he,heo->ho", bv.reshape(heads, hd), wo_r),
                         Lk, axis=0).astype(jnp.float32)           # (heads*Lk, Dq)
    bo2 = bo.reshape(1, Dq).astype(jnp.float32)

    # Additive block-diagonal mask: 0 where q-row and k-col share a head.
    row_h = jnp.arange(heads * Lq) // Lq
    col_h = jnp.arange(heads * Lk) // Lk
    mask = jnp.where(row_h[:, None] == col_h[None, :], 0.0, -1e30).astype(jnp.float32)

    return dict(wq_aug=wq_aug, wk_aug=wk_aug, wvo_aug=wvo_aug,
                bq_stk=bq_stk, bk_stk=bk_stk, bvo_stk=bvo_stk,
                bo=bo2, mask=mask)


# --------------------------------------------------------------------------
# Per-call wrapper
# --------------------------------------------------------------------------
def cross_attention_pallas(query, key, value, consts, heads):
    """query: (B, Lq, Dq); key/value: (B, Lk, Dkv). Returns (B, Lq, Dq)."""
    B, Lq, Dq = query.shape
    _, Lk, Dkv = key.shape
    assert Dkv % heads == 0, "Key/Value dim must be divisible by heads"
    hd = Dkv // heads
    compute_dtype = consts["wq_aug"].dtype

    # Block-diagonal "augmented" activations: row order (b, h, i), column
    # block h' carries the input row iff h' == h (zeros elsewhere).
    eye = jnp.eye(heads, dtype=query.dtype)

    def head_stack(x, L, D):
        return (x[:, None, :, None, :] * eye[None, :, None, :, None]).reshape(
            B * heads * L, heads * D)

    q_aug = head_stack(query, Lq, Dq).astype(compute_dtype)    # (B*heads*Lq, heads*Dq)
    k_aug = head_stack(key, Lk, Dkv).astype(compute_dtype)     # (B*heads*Lk, heads*Dkv)
    v_aug = head_stack(value, Lk, Dkv).astype(compute_dtype)   # (B*heads*Lk, heads*Dkv)

    kernel = _make_kernel(heads, Lq, Lk, compute_dtype)

    def const_spec(shape):
        return pl.BlockSpec(shape, lambda b: (0, 0))

    out2 = pl.pallas_call(
        kernel,
        out_shape=jax.ShapeDtypeStruct((B * Lq, Dq), query.dtype),
        grid=(B,),   # parallel over batch -> both TensorCores on v7x
        in_specs=[
            pl.BlockSpec((heads * Lq, heads * Dq), lambda b: (b, 0)),   # q_aug
            pl.BlockSpec((heads * Lk, heads * Dkv), lambda b: (b, 0)),  # k_aug
            pl.BlockSpec((heads * Lk, heads * Dkv), lambda b: (b, 0)),  # v_aug
            const_spec((heads * Dq, hd)),        # wq_aug (scale folded)
            const_spec((heads * Lq, hd)),        # bq_stk
            const_spec((heads * Dkv, hd)),       # wk_aug
            const_spec((heads * Lk, hd)),        # bk_stk
            const_spec((heads * Dkv, Dq)),       # wvo_aug (Wv@Wo fused)
            const_spec((heads * Lk, Dq)),        # bvo_stk
            const_spec((1, Dq)),                 # bo
            const_spec((heads * Lq, heads * Lk)),  # block-diagonal mask bias
        ],
        out_specs=pl.BlockSpec((Lq, Dq), lambda b: (b, 0)),
        compiler_params=pltpu.CompilerParams(dimension_semantics=("parallel",)),
    )(q_aug, k_aug, v_aug,
      consts["wq_aug"], consts["bq_stk"], consts["wk_aug"], consts["bk_stk"],
      consts["wvo_aug"], consts["bvo_stk"], consts["bo"], consts["mask"])

    return out2.reshape(B, Lq, Dq)


# --------------------------------------------------------------------------
# Pure-JAX reference (mirrors the PyTorch forward, eval mode)
# --------------------------------------------------------------------------
def reference_cross_attention(query, key, value, params, heads):
    wq, bq, wk, bk, wv, bv, wo, bo = params
    B, Lq, Dq = query.shape
    Lk = key.shape[1]
    Dkv = wq.shape[1]
    hd = Dkv // heads
    scale = hd ** (-0.5)

    q = query @ wq + bq
    k = key @ wk + bk
    v = value @ wv + bv
    q = q.reshape(B, Lq, heads, hd).transpose(0, 2, 1, 3)
    k = k.reshape(B, Lk, heads, hd).transpose(0, 2, 1, 3)
    v = v.reshape(B, Lk, heads, hd).transpose(0, 2, 1, 3)
    attn = jnp.einsum("bhqd,bhkd->bhqk", q, k) * scale
    attn = jax.nn.softmax(attn, axis=-1)
    out = jnp.einsum("bhqk,bhkd->bhqd", attn, v)
    out = out.transpose(0, 2, 1, 3).reshape(B, Lq, Dkv)
    return out @ wo + bo


def init_params(key, query_dim, key_value_dim):
    """Deterministic parameter init; weights stored as (in, out)."""
    ks = jax.random.split(key, 8)

    def lin(kw, kb, fan_in, fan_out):
        bound = 1.0 / (fan_in ** 0.5)
        w = jax.random.uniform(kw, (fan_in, fan_out), jnp.float32, -bound, bound)
        b = jax.random.uniform(kb, (fan_out,), jnp.float32, -bound, bound)
        return w, b

    wq, bq = lin(ks[0], ks[1], query_dim, key_value_dim)
    wk, bk = lin(ks[2], ks[3], key_value_dim, key_value_dim)
    wv, bv = lin(ks[4], ks[5], key_value_dim, key_value_dim)
    wo, bo = lin(ks[6], ks[7], key_value_dim, query_dim)
    return (wq, bq, wk, bk, wv, bv, wo, bo)


if __name__ == "__main__":
    # Small shapes consistent with the module's forward.
    B, Lq, Lk = 2, 8, 8
    query_dim, key_value_dim, heads = 32, 32, 4

    root = jax.random.PRNGKey(0)
    k_params, k_q, k_k, k_v = jax.random.split(root, 4)

    params = init_params(k_params, query_dim, key_value_dim)
    query = jax.random.normal(k_q, (B, Lq, query_dim), jnp.float32)
    key = jax.random.normal(k_k, (B, Lk, key_value_dim), jnp.float32)
    value = jax.random.normal(k_v, (B, Lk, key_value_dim), jnp.float32)

    ref = reference_cross_attention(query, key, value, params, heads)

    # f32 MXU operands: tight tolerance (only the approx EUP reciprocal differs).
    consts_f32 = prepare_cross_attention_constants(params, heads, Lq, Lk,
                                                   compute_dtype=jnp.float32)
    out_f32 = jax.block_until_ready(
        cross_attention_pallas(query, key, value, consts_f32, heads))
    assert out_f32.shape == (B, Lq, query_dim)
    assert jnp.allclose(out_f32, ref, atol=2e-3, rtol=2e-3), "f32 mismatch vs reference"

    # bf16 MXU operands (recommended mode on v5e/v6e/v7x): looser tolerance,
    # softmax math stays f32 inside the kernel.
    consts_bf16 = prepare_cross_attention_constants(params, heads, Lq, Lk,
                                                    compute_dtype=jnp.bfloat16)
    out_bf16 = jax.block_until_ready(
        cross_attention_pallas(query, key, value, consts_bf16, heads))
    assert out_bf16.shape == (B, Lq, query_dim)
    assert jnp.allclose(out_bf16, ref, atol=5e-2, rtol=5e-2), "bf16 mismatch vs reference"

    print("KERNEL_OK")
</pallas_src>

<mosaic_0001>
module attributes {stable_mosaic.version = 11 : i64} {
  func.func @kernel(%arg0: i32, %arg1: memref<32x128xf32, #tpu.memory_space<vmem>>, %arg2: memref<32x128xf32, #tpu.memory_space<vmem>>, %arg3: memref<32x128xf32, #tpu.memory_space<vmem>>, %arg4: memref<128x8xf32, #tpu.memory_space<vmem>>, %arg5: memref<32x8xf32, #tpu.memory_space<vmem>>, %arg6: memref<128x8xf32, #tpu.memory_space<vmem>>, %arg7: memref<32x8xf32, #tpu.memory_space<vmem>>, %arg8: memref<128x32xf32, #tpu.memory_space<vmem>>, %arg9: memref<32x32xf32, #tpu.memory_space<vmem>>, %arg10: memref<1x32xf32, #tpu.memory_space<vmem>>, %arg11: memref<32x32xf32, #tpu.memory_space<vmem>>, %arg12: memref<8x32xf32, #tpu.memory_space<vmem>>) attributes {dimension_semantics = [#tpu.dimension_semantics<parallel>], iteration_bounds = array<i64: 2>, scalar_prefetch = 0 : i64, scratch_operands = 0 : i64, tpu.core_type = #tpu.core_type<tc>, window_params = [{transform_indices = @transform_0, window_bounds = array<i64: 32, 128>}, {transform_indices = @transform_1, window_bounds = array<i64: 32, 128>}, {transform_indices = @transform_2, window_bounds = array<i64: 32, 128>}, {pipeline_mode = #tpu.pipeline_mode<synchronous>, transform_indices = @transform_3, window_bounds = array<i64: 128, 8>}, {pipeline_mode = #tpu.pipeline_mode<synchronous>, transform_indices = @transform_4, window_bounds = array<i64: 32, 8>}, {pipeline_mode = #tpu.pipeline_mode<synchronous>, transform_indices = @transform_5, window_bounds = array<i64: 128, 8>}, {pipeline_mode = #tpu.pipeline_mode<synchronous>, transform_indices = @transform_6, window_bounds = array<i64: 32, 8>}, {pipeline_mode = #tpu.pipeline_mode<synchronous>, transform_indices = @transform_7, window_bounds = array<i64: 128, 32>}, {pipeline_mode = #tpu.pipeline_mode<synchronous>, transform_indices = @transform_8, window_bounds = array<i64: 32, 32>}, {pipeline_mode = #tpu.pipeline_mode<synchronous>, transform_indices = @transform_9, window_bounds = array<i64: 1, 32>}, {pipeline_mode = #tpu.pipeline_mode<synchronous>, transform_indices = @transform_10, window_bounds = array<i64: 32, 32>}, {transform_indices = @transform_11, window_bounds = array<i64: 8, 32>}]} {
    %c0 = arith.constant 0 : index
    %c0_0 = arith.constant 0 : index
    %0 = vector.load %arg1[%c0, %c0_0] : memref<32x128xf32, #tpu.memory_space<vmem>>, vector<32x128xf32>
    %c0_1 = arith.constant 0 : index
    %c0_2 = arith.constant 0 : index
    %1 = vector.load %arg4[%c0_1, %c0_2] : memref<128x8xf32, #tpu.memory_space<vmem>>, vector<128x8xf32>
    %cst = arith.constant dense<0.000000e+00> : vector<32x8xf32>
    %2 = tpu.matmul %0, %1, %cst {dimension_numbers = #tpu.dot_dimension_numbers<[1], [0], [0], [1], [0, 0, 1, 1], [], []>} : vector<32x128xf32>, vector<128x8xf32>, vector<32x8xf32> -> vector<32x8xf32>
    %c0_3 = arith.constant 0 : index
    %c0_4 = arith.constant 0 : index
    %3 = vector.load %arg5[%c0_3, %c0_4] : memref<32x8xf32, #tpu.memory_space<vmem>>, vector<32x8xf32>
    %4 = arith.addf %2, %3 : vector<32x8xf32>
    %c0_5 = arith.constant 0 : index
    %c0_6 = arith.constant 0 : index
    %5 = vector.load %arg2[%c0_5, %c0_6] : memref<32x128xf32, #tpu.memory_space<vmem>>, vector<32x128xf32>
    %c0_7 = arith.constant 0 : index
    %c0_8 = arith.constant 0 : index
    %6 = vector.load %arg6[%c0_7, %c0_8] : memref<128x8xf32, #tpu.memory_space<vmem>>, vector<128x8xf32>
    %cst_9 = arith.constant dense<0.000000e+00> : vector<32x8xf32>
    %7 = tpu.matmul %5, %6, %cst_9 {dimension_numbers = #tpu.dot_dimension_numbers<[1], [0], [0], [1], [0, 0, 1, 1], [], []>} : vector<32x128xf32>, vector<128x8xf32>, vector<32x8xf32> -> vector<32x8xf32>
    %c0_10 = arith.constant 0 : index
    %c0_11 = arith.constant 0 : index
    %8 = vector.load %arg7[%c0_10, %c0_11] : memref<32x8xf32, #tpu.memory_space<vmem>>, vector<32x8xf32>
    %9 = arith.addf %7, %8 : vector<32x8xf32>
    %c0_12 = arith.constant 0 : index
    %c0_13 = arith.constant 0 : index
    %10 = vector.load %arg3[%c0_12, %c0_13] : memref<32x128xf32, #tpu.memory_space<vmem>>, vector<32x128xf32>
    %c0_14 = arith.constant 0 : index
    %c0_15 = arith.constant 0 : index
    %11 = vector.load %arg8[%c0_14, %c0_15] : memref<128x32xf32, #tpu.memory_space<vmem>>, vector<128x32xf32>
    %cst_16 = arith.constant dense<0.000000e+00> : vector<32x32xf32>
    %12 = tpu.matmul %10, %11, %cst_16 {dimension_numbers = #tpu.dot_dimension_numbers<[1], [0], [0], [1], [0, 0, 1, 1], [], []>} : vector<32x128xf32>, vector<128x32xf32>, vector<32x32xf32> -> vector<32x32xf32>
    %c0_17 = arith.constant 0 : index
    %c0_18 = arith.constant 0 : index
    %13 = vector.load %arg9[%c0_17, %c0_18] : memref<32x32xf32, #tpu.memory_space<vmem>>, vector<32x32xf32>
    %14 = arith.addf %12, %13 : vector<32x32xf32>
    %cst_19 = arith.constant dense<0.000000e+00> : vector<32x32xf32>
    %15 = tpu.matmul %4, %9, %cst_19 {dimension_numbers = #tpu.dot_dimension_numbers<[1], [1], [0], [0], [0, 0, 1, 0], [], []>} : vector<32x8xf32>, vector<32x8xf32>, vector<32x32xf32> -> vector<32x32xf32>
    %c0_20 = arith.constant 0 : index
    %c0_21 = arith.constant 0 : index
    %16 = vector.load %arg11[%c0_20, %c0_21] : memref<32x32xf32, #tpu.memory_space<vmem>>, vector<32x32xf32>
    %17 = arith.addf %15, %16 : vector<32x32xf32>
    %cst_22 = arith.constant dense<0xFF800000> : vector<32xf32>
    %18 = vector.multi_reduction <maximumf>, %17, %cst_22 [1] : vector<32x32xf32> to vector<32xf32>
    %19 = vector.shape_cast %18 : vector<32xf32> to vector<32x1xf32>
    %20 = vector.broadcast %19 : vector<32x1xf32> to vector<32x32xf32>
    %21 = arith.subf %17, %20 : vector<32x32xf32>
    %22 = math.exp %21 : vector<32x32xf32>
    %cst_23 = arith.constant dense<0.000000e+00> : vector<32xf32>
    %23 = vector.multi_reduction <add>, %22, %cst_23 [1] : vector<32x32xf32> to vector<32xf32>
    %24 = vector.shape_cast %23 : vector<32xf32> to vector<32x1xf32>
    %25 = tpu.reciprocal %24 {approx = true} : vector<32x1xf32> -> vector<32x1xf32>
    %26 = vector.broadcast %25 : vector<32x1xf32> to vector<32x32xf32>
    %27 = arith.mulf %22, %26 : vector<32x32xf32>
    %cst_24 = arith.constant dense<0.000000e+00> : vector<32x32xf32>
    %28 = tpu.matmul %27, %14, %cst_24 {dimension_numbers = #tpu.dot_dimension_numbers<[1], [0], [0], [1], [0, 0, 1, 1], [], []>} : vector<32x32xf32>, vector<32x32xf32>, vector<32x32xf32> -> vector<32x32xf32>
    %29 = vector.extract_strided_slice %28 {offsets = [0, 0], sizes = [8, 32], strides = [1, 1]} : vector<32x32xf32> to vector<8x32xf32>
    %30 = vector.extract_strided_slice %28 {offsets = [8, 0], sizes = [8, 32], strides = [1, 1]} : vector<32x32xf32> to vector<8x32xf32>
    %31 = arith.addf %29, %30 : vector<8x32xf32>
    %32 = vector.extract_strided_slice %28 {offsets = [16, 0], sizes = [8, 32], strides = [1, 1]} : vector<32x32xf32> to vector<8x32xf32>
    %33 = arith.addf %31, %32 : vector<8x32xf32>
    %34 = vector.extract_strided_slice %28 {offsets = [24, 0], sizes = [8, 32], strides = [1, 1]} : vector<32x32xf32> to vector<8x32xf32>
    %35 = arith.addf %33, %34 : vector<8x32xf32>
    %c0_25 = arith.constant 0 : index
    %c0_26 = arith.constant 0 : index
    %36 = vector.load %arg10[%c0_25, %c0_26] : memref<1x32xf32, #tpu.memory_space<vmem>>, vector<1x32xf32>
    %37 = vector.broadcast %36 : vector<1x32xf32> to vector<8x32xf32>
    %38 = arith.addf %35, %37 : vector<8x32xf32>
    %c0_27 = arith.constant 0 : index
    %c0_28 = arith.constant 0 : index
    %39 = vector.load %arg12[%c0_27, %c0_28] : memref<8x32xf32, #tpu.memory_space<vmem>>, vector<8x32xf32>
    tpu.vector_store %arg12[%c0_27, %c0_28], %38 {strides = array<i32>} : memref<8x32xf32, #tpu.memory_space<vmem>>, vector<8x32xf32>,
    return
  }
  func.func @transform_0(%arg0: i32) -> (i32, i32) {
    %c0_i32 = arith.constant 0 : i32
    %c0_i32_0 = arith.constant 0 : i32
    return %arg0, %c0_i32 : i32, i32
  }
  func.func @transform_1(%arg0: i32) -> (i32, i32) {
    %c0_i32 = arith.constant 0 : i32
    %c0_i32_0 = arith.constant 0 : i32
    return %arg0, %c0_i32 : i32, i32
  }
  func.func @transform_2(%arg0: i32) -> (i32, i32) {
    %c0_i32 = arith.constant 0 : i32
    %c0_i32_0 = arith.constant 0 : i32
    return %arg0, %c0_i32 : i32, i32
  }
  func.func @transform_3(%arg0: i32) -> (i32, i32) {
    %c0_i32 = arith.constant 0 : i32
    %c0_i32_0 = arith.constant 0 : i32
    %c0_i32_1 = arith.constant 0 : i32
    return %c0_i32, %c0_i32_0 : i32, i32
  }
  func.func @transform_4(%arg0: i32) -> (i32, i32) {
    %c0_i32 = arith.constant 0 : i32
    %c0_i32_0 = arith.constant 0 : i32
    %c0_i32_1 = arith.constant 0 : i32
    return %c0_i32, %c0_i32_0 : i32, i32
  }
  func.func @transform_5(%arg0: i32) -> (i32, i32) {
    %c0_i32 = arith.constant 0 : i32
    %c0_i32_0 = arith.constant 0 : i32
    %c0_i32_1 = arith.constant 0 : i32
    return %c0_i32, %c0_i32_0 : i32, i32
  }
  func.func @transform_6(%arg0: i32) -> (i32, i32) {
    %c0_i32 = arith.constant 0 : i32
    %c0_i32_0 = arith.constant 0 : i32
    %c0_i32_1 = arith.constant 0 : i32
    return %c0_i32, %c0_i32_0 : i32, i32
  }
  func.func @transform_7(%arg0: i32) -> (i32, i32) {
    %c0_i32 = arith.constant 0 : i32
    %c0_i32_0 = arith.constant 0 : i32
    %c0_i32_1 = arith.constant 0 : i32
    return %c0_i32, %c0_i32_0 : i32, i32
  }
  func.func @transform_8(%arg0: i32) -> (i32, i32) {
    %c0_i32 = arith.constant 0 : i32
    %c0_i32_0 = arith.constant 0 : i32
    %c0_i32_1 = arith.constant 0 : i32
    return %c0_i32, %c0_i32_0 : i32, i32
  }
  func.func @transform_9(%arg0: i32) -> (i32, i32) {
    %c0_i32 = arith.constant 0 : i32
    %c0_i32_0 = arith.constant 0 : i32
    %c0_i32_1 = arith.constant 0 : i32
    return %c0_i32, %c0_i32_0 : i32, i32
  }
  func.func @transform_10(%arg0: i32) -> (i32, i32) {
    %c0_i32 = arith.constant 0 : i32
    %c0_i32_0 = arith.constant 0 : i32
    %c0_i32_1 = arith.constant 0 : i32
    return %c0_i32, %c0_i32_0 : i32, i32
  }
  func.func @transform_11(%arg0: i32) -> (i32, i32) {
    %c0_i32 = arith.constant 0 : i32
    %c0_i32_0 = arith.constant 0 : i32
    return %arg0, %c0_i32 : i32, i32
  }
}

</mosaic_0001>

<llo_original>
// kernel: tpu_custom_call.1
$region0: #{tpu_custom_call.1}
  #allocation0 [shape = 'u32[]', space=smem, size = 0x4, offset = 0x4, fixed_abs, tag = 'smem constant byte address 0x4 - core index']
  #allocation1 [shape = 'u32[144,128]{1,0:T(1,128)}', space=vmem, size = 0x12000, scoped, tag = 'internal scratch']
  %s0 = inlined_call_operand.vmem [shape: f32[64,128], index: 0, kind: input, shape index: {}]
  %s1 = inlined_call_operand.vmem [shape: f32[64,128], index: 1, kind: input, shape index: {}]
  %s2 = inlined_call_operand.vmem [shape: f32[64,128], index: 2, kind: input, shape index: {}]
  %s3 = inlined_call_operand.vmem [shape: f32[128,8], index: 3, kind: input, shape index: {}]
  %s4 = inlined_call_operand.vmem [shape: f32[32,8], index: 4, kind: input, shape index: {}]
  %s5 = inlined_call_operand.vmem [shape: f32[128,8], index: 5, kind: input, shape index: {}]
  %s6 = inlined_call_operand.vmem [shape: f32[32,8], index: 6, kind: input, shape index: {}]
  %s7 = inlined_call_operand.vmem [shape: f32[128,32], index: 7, kind: input, shape index: {}]
  %s8 = inlined_call_operand.vmem [shape: f32[32,32], index: 8, kind: input, shape index: {}]
  %s9 = inlined_call_operand.vmem [shape: f32[1,32], index: 9, kind: input, shape index: {}]
  %s10 = inlined_call_operand.vmem [shape: f32[32,32], index: 10, kind: input, shape index: {}]
  %s11 = inlined_call_operand.hbm [shape: f32[16,32], index: 11, kind: output, shape index: {}]
  %s12 = sld [smem:[#allocation0]]
  $region77: #{tpu_custom_call.1} parent=0
    _
  %s14 = ssub.s32 1, %s12
  %s15 = scalar_select 0, %s14, %s12
  $region1: #{tpu_custom_call.1} parent=0
    #allocation2 [shape = 'u8[8192]{0}', space=vmem, size = 0x2000, scoped, tag = 'output window, operand 0']
    #allocation3 [shape = 's32[2]{0}', space=sflag, size = 0x8, scoped, tag = 'scoped memory for tpu_custom_call.1']
    %16 = vsyncpa [#allocation3], 0
    %s17 = scalar_lea.sflag [#allocation3], 1
    %18 = vsyncpa %s17, 0
    loop: start=0, step=1, limit=4
    $region2: #{tpu_custom_call.1} parent=1 // loop_pre_header
      _
    $region3: #{tpu_custom_call.1} parent=1 // loop_header
      %s20 = sphi 0, %s24
      %p21 = scmp.ge.s32.totalorder %s20, 4
      %s30 = sphi 0, %s32
      %s33 = sphi 0, %s30
      %s34 = sphi 0, %s33
      %s50 = sphi 0, %s34
      %s56 = sphi 0, %s58
      %s59 = sphi 0, %s56
      %s60 = sphi 0, %s59
      %s76 = sphi 0, %s60
      %s82 = sphi 0, %s84
      %s85 = sphi 0, %s82
      %s86 = sphi 0, %s85
      %s102 = sphi 0, %s86
      %s106 = sphi 0, %s106
      %s108 = sphi 0, %s106
      %s109 = sphi 0, %s108
      %s123 = sphi 0, %s109
      %s127 = sphi 0, %s127
      %s129 = sphi 0, %s127
      %s130 = sphi 0, %s129
      %s144 = sphi 0, %s130
      %s148 = sphi 0, %s148
      %s150 = sphi 0, %s148
      %s151 = sphi 0, %s150
      %s165 = sphi 0, %s151
      %s169 = sphi 0, %s169
      %s171 = sphi 0, %s169
      %s172 = sphi 0, %s171
      %s186 = sphi 0, %s172
      %s190 = sphi 0, %s190
      %s192 = sphi 0, %s190
      %s193 = sphi 0, %s192
      %s207 = sphi 0, %s193
      %s211 = sphi 0, %s211
      %s213 = sphi 0, %s211
      %s214 = sphi 0, %s213
      %s228 = sphi 0, %s214
      %s232 = sphi 0, %s232
      %s234 = sphi 0, %s232
      %s235 = sphi 0, %s234
      %s249 = sphi 0, %s235
      %s253 = sphi 0, %s253
      %s255 = sphi 0, %s253
      %s256 = sphi 0, %s255
      %s270 = sphi 0, %s256
      %s276 = sphi 0, %s278
      %s279 = sphi 0, %s276
      %s280 = sphi 0, %s279
      %s296 = sphi 0, %s280
    $region4: #{tpu_custom_call.1} parent=1 // loop_header_branch
      %23 = sbr.rel (%p21) target = $region8
    $region5: #{tpu_custom_call.1} parent=1 // loop_body
      %s25 = ssub.s32 %s20, 1
      %s26 = ssub.s32 %s20, 2
      %s27 = sadd.s32 %s20, 1
      %s28 = ssub.s32 %s20, %s27
      %p29 = scmp.eq.s32.totalorder %s28, 0
      %s31 = sadd.s32 %s30, 1
      %s32 = scalar_select %p29, %s30, %s31
      %p35 = pneg %p29
      %p36 = scmp.eq.s32.totalorder %s20, 1
      %p37 = por %p35, %p36
      %p38 = scmp.ne.s32.totalorder %s30, %s33
      %p39 = scmp.eq.s32.totalorder %s20, 0
      %p40 = por %p38, %p39
      %p41 = scmp.ne.s32.totalorder %s30, %s33
      %p42 = scmp.eq.s32.totalorder %s25, 1
      %p43 = por %p41, %p42
      %p44 = scmp.ne.s32.totalorder %s33, %s34
      %p45 = scmp.eq.s32.totalorder %s25, 0
      %p46 = por %p44, %p45
      %p47 = scmp.ne.s32.totalorder %s33, %s34
      %p48 = scmp.eq.s32.totalorder %s26, 1
      %p49 = por %p47, %p48
      %p51 = scmp.ne.s32.totalorder %s34, %s50
      %p52 = scmp.eq.s32.totalorder %s26, 0
      %p53 = por %p51, %p52
      %s54 = ssub.s32 %s20, %s27
      %p55 = scmp.eq.s32.totalorder %s54, 0
      %s57 = sadd.s32 %s56, 1
      %s58 = scalar_select %p55, %s56, %s57
      %p61 = pneg %p55
      %p62 = scmp.eq.s32.totalorder %s20, 1
      %p63 = por %p61, %p62
      %p64 = scmp.ne.s32.totalorder %s56, %s59
      %p65 = scmp.eq.s32.totalorder %s20, 0
      %p66 = por %p64, %p65
      %p67 = scmp.ne.s32.totalorder %s56, %s59
      %p68 = scmp.eq.s32.totalorder %s25, 1
      %p69 = por %p67, %p68
      %p70 = scmp.ne.s32.totalorder %s59, %s60
      %p71 = scmp.eq.s32.totalorder %s25, 0
      %p72 = por %p70, %p71
      %p73 = scmp.ne.s32.totalorder %s59, %s60
      %p74 = scmp.eq.s32.totalorder %s26, 1
      %p75 = por %p73, %p74
      %p77 = scmp.ne.s32.totalorder %s60, %s76
      %p78 = scmp.eq.s32.totalorder %s26, 0
      %p79 = por %p77, %p78
      %s80 = ssub.s32 %s20, %s27
      %p81 = scmp.eq.s32.totalorder %s80, 0
      %s83 = sadd.s32 %s82, 1
      %s84 = scalar_select %p81, %s82, %s83
      %p87 = pneg %p81
      %p88 = scmp.eq.s32.totalorder %s20, 1
      %p89 = por %p87, %p88
      %p90 = scmp.ne.s32.totalorder %s82, %s85
      %p91 = scmp.eq.s32.totalorder %s20, 0
      %p92 = por %p90, %p91
      %p93 = scmp.ne.s32.totalorder %s82, %s85
      %p94 = scmp.eq.s32.totalorder %s25, 1
      %p95 = por %p93, %p94
      %p96 = scmp.ne.s32.totalorder %s85, %s86
      %p97 = scmp.eq.s32.totalorder %s25, 0
      %p98 = por %p96, %p97
      %p99 = scmp.ne.s32.totalorder %s85, %s86
      %p100 = scmp.eq.s32.totalorder %s26, 1
      %p101 = por %p99, %p100
      %p103 = scmp.ne.s32.totalorder %s86, %s102
      %p104 = scmp.eq.s32.totalorder %s26, 0
      %p105 = por %p103, %p104
      %s107 = sadd.s32 %s106, 1
      %p110 = scmp.eq.s32.totalorder %s20, 1
      %p111 = scmp.ne.s32.totalorder %s106, %s108
      %p112 = scmp.eq.s32.totalorder %s20, 0
      %p113 = por %p111, %p112
      %p114 = scmp.ne.s32.totalorder %s106, %s108
      %p115 = scmp.eq.s32.totalorder %s25, 1
      %p116 = por %p114, %p115
      %p117 = scmp.ne.s32.totalorder %s108, %s109
      %p118 = scmp.eq.s32.totalorder %s25, 0
      %p119 = por %p117, %p118
      %p120 = scmp.ne.s32.totalorder %s108, %s109
      %p121 = scmp.eq.s32.totalorder %s26, 1
      %p122 = por %p120, %p121
      %p124 = scmp.ne.s32.totalorder %s109, %s123
      %p125 = scmp.eq.s32.totalorder %s26, 0
      %p126 = por %p124, %p125
      %s128 = sadd.s32 %s127, 1
      %p131 = scmp.eq.s32.totalorder %s20, 1
      %p132 = scmp.ne.s32.totalorder %s127, %s129
      %p133 = scmp.eq.s32.totalorder %s20, 0
      %p134 = por %p132, %p133
      %p135 = scmp.ne.s32.totalorder %s127, %s129
      %p136 = scmp.eq.s32.totalorder %s25, 1
      %p137 = por %p135, %p136
      %p138 = scmp.ne.s32.totalorder %s129, %s130
      %p139 = scmp.eq.s32.totalorder %s25, 0
      %p140 = por %p138, %p139
      %p141 = scmp.ne.s32.totalorder %s129, %s130
      %p142 = scmp.eq.s32.totalorder %s26, 1
      %p143 = por %p141, %p142
      %p145 = scmp.ne.s32.totalorder %s130, %s144
      %p146 = scmp.eq.s32.totalorder %s26, 0
      %p147 = por %p145, %p146
      %s149 = sadd.s32 %s148, 1
      %p152 = scmp.eq.s32.totalorder %s20, 1
      %p153 = scmp.ne.s32.totalorder %s148, %s150
      %p154 = scmp.eq.s32.totalorder %s20, 0
      %p155 = por %p153, %p154
      %p156 = scmp.ne.s32.totalorder %s148, %s150
      %p157 = scmp.eq.s32.totalorder %s25, 1
      %p158 = por %p156, %p157
      %p159 = scmp.ne.s32.totalorder %s150, %s151
      %p160 = scmp.eq.s32.totalorder %s25, 0
      %p161 = por %p159, %p160
      %p162 = scmp.ne.s32.totalorder %s150, %s151
      %p163 = scmp.eq.s32.totalorder %s26, 1
      %p164 = por %p162, %p163
      %p166 = scmp.ne.s32.totalorder %s151, %s165
      %p167 = scmp.eq.s32.totalorder %s26, 0
      %p168 = por %p166, %p167
      %s170 = sadd.s32 %s169, 1
      %p173 = scmp.eq.s32.totalorder %s20, 1
      %p174 = scmp.ne.s32.totalorder %s169, %s171
      %p175 = scmp.eq.s32.totalorder %s20, 0
      %p176 = por %p174, %p175
      %p177 = scmp.ne.s32.totalorder %s169, %s171
      %p178 = scmp.eq.s32.totalorder %s25, 1
      %p179 = por %p177, %p178
      %p180 = scmp.ne.s32.totalorder %s171, %s172
      %p181 = scmp.eq.s32.totalorder %s25, 0
      %p182 = por %p180, %p181
      %p183 = scmp.ne.s32.totalorder %s171, %s172
      %p184 = scmp.eq.s32.totalorder %s26, 1
      %p185 = por %p183, %p184
      %p187 = scmp.ne.s32.totalorder %s172, %s186
      %p188 = scmp.eq.s32.totalorder %s26, 0
      %p189 = por %p187, %p188
      %s191 = sadd.s32 %s190, 1
      %p194 = scmp.eq.s32.totalorder %s20, 1
      %p195 = scmp.ne.s32.totalorder %s190, %s192
      %p196 = scmp.eq.s32.totalorder %s20, 0
      %p197 = por %p195, %p196
      %p198 = scmp.ne.s32.totalorder %s190, %s192
      %p199 = scmp.eq.s32.totalorder %s25, 1
      %p200 = por %p198, %p199
      %p201 = scmp.ne.s32.totalorder %s192, %s193
      %p202 = scmp.eq.s32.totalorder %s25, 0
      %p203 = por %p201, %p202
      %p204 = scmp.ne.s32.totalorder %s192, %s193
      %p205 = scmp.eq.s32.totalorder %s26, 1
      %p206 = por %p204, %p205
      %p208 = scmp.ne.s32.totalorder %s193, %s207
      %p209 = scmp.eq.s32.totalorder %s26, 0
      %p210 = por %p208, %p209
      %s212 = sadd.s32 %s211, 1
      %p215 = scmp.eq.s32.totalorder %s20, 1
      %p216 = scmp.ne.s32.totalorder %s211, %s213
      %p217 = scmp.eq.s32.totalorder %s20, 0
      %p218 = por %p216, %p217
      %p219 = scmp.ne.s32.totalorder %s211, %s213
      %p220 = scmp.eq.s32.totalorder %s25, 1
      %p221 = por %p219, %p220
      %p222 = scmp.ne.s32.totalorder %s213, %s214
      %p223 = scmp.eq.s32.totalorder %s25, 0
      %p224 = por %p222, %p223
      %p225 = scmp.ne.s32.totalorder %s213, %s214
      %p226 = scmp.eq.s32.totalorder %s26, 1
      %p227 = por %p225, %p226
      %p229 = scmp.ne.s32.totalorder %s214, %s228
      %p230 = scmp.eq.s32.totalorder %s26, 0
      %p231 = por %p229, %p230
      %s233 = sadd.s32 %s232, 1
      %p236 = scmp.eq.s32.totalorder %s20, 1
      %p237 = scmp.ne.s32.totalorder %s232, %s234
      %p238 = scmp.eq.s32.totalorder %s20, 0
      %p239 = por %p237, %p238
      %p240 = scmp.ne.s32.totalorder %s232, %s234
      %p241 = scmp.eq.s32.totalorder %s25, 1
      %p242 = por %p240, %p241
      %p243 = scmp.ne.s32.totalorder %s234, %s235
      %p244 = scmp.eq.s32.totalorder %s25, 0
      %p245 = por %p243, %p244
      %p246 = scmp.ne.s32.totalorder %s234, %s235
      %p247 = scmp.eq.s32.totalorder %s26, 1
      %p248 = por %p246, %p247
      %p250 = scmp.ne.s32.totalorder %s235, %s249
      %p251 = scmp.eq.s32.totalorder %s26, 0
      %p252 = por %p250, %p251
      %s254 = sadd.s32 %s253, 1
      %p257 = scmp.eq.s32.totalorder %s20, 1
      %p258 = scmp.ne.s32.totalorder %s253, %s255
      %p259 = scmp.eq.s32.totalorder %s20, 0
      %p260 = por %p258, %p259
      %p261 = scmp.ne.s32.totalorder %s253, %s255
      %p262 = scmp.eq.s32.totalorder %s25, 1
      %p263 = por %p261, %p262
      %p264 = scmp.ne.s32.totalorder %s255, %s256
      %p265 = scmp.eq.s32.totalorder %s25, 0
      %p266 = por %p264, %p265
      %p267 = scmp.ne.s32.totalorder %s255, %s256
      %p268 = scmp.eq.s32.totalorder %s26, 1
      %p269 = por %p267, %p268
      %p271 = scmp.ne.s32.totalorder %s256, %s270
      %p272 = scmp.eq.s32.totalorder %s26, 0
      %p273 = por %p271, %p272
      %s274 = ssub.s32 %s20, %s27
      %p275 = scmp.eq.s32.totalorder %s274, 0
      %s277 = sadd.s32 %s276, 1
      %s278 = scalar_select %p275, %s276, %s277
      %p281 = pneg %p275
      %p282 = scmp.eq.s32.totalorder %s20, 1
      %p283 = por %p281, %p282
      %p284 = scmp.ne.s32.totalorder %s276, %s279
      %p285 = scmp.eq.s32.totalorder %s20, 0
      %p286 = por %p284, %p285
      %p287 = scmp.ne.s32.totalorder %s276, %s279
      %p288 = scmp.eq.s32.totalorder %s25, 1
      %p289 = por %p287, %p288
      %p290 = scmp.ne.s32.totalorder %s279, %s280
      %p291 = scmp.eq.s32.totalorder %s25, 0
      %p292 = por %p290, %p291
      %p293 = scmp.ne.s32.totalorder %s279, %s280
      %p294 = scmp.eq.s32.totalorder %s26, 1
      %p295 = por %p293, %p294
      %p297 = scmp.ne.s32.totalorder %s280, %s296
      %p298 = scmp.eq.s32.totalorder %s26, 0
      %p299 = por %p297, %p298
      %p300 = scmp.le.s32.totalorder 1, %s20
      %p301 = scmp.lt.s32.totalorder %s20, 3
      %p302 = pnand %p300, %p301
      %p303 = pneg %p302
      // Predicated region
      $region9: #{tpu_custom_call.1} parent=5 // pred_check
        _
      $region10: #{tpu_custom_call.1} parent=5 // pred_check_branch
        %305 = sbr.rel (%p302) target = $region12
      $region11: #{tpu_custom_call.1} parent=5 // pred_region
        %s306 = ssub.s32 %s20, 1
        // Predicated region
        $region13: #{tpu_custom_call.1} parent=11 // pred_check
          %p307 = pneg %p119
        $region14: #{tpu_custom_call.1} parent=11 // pred_check_branch
          %309 = sbr.rel (%p307) target = $region16
        $region15: #{tpu_custom_call.1} parent=11 // pred_region
          _
        $region16: #{tpu_custom_call.1} parent=11 // pred_fallthru
          _
        // Predicated region
        $region17: #{tpu_custom_call.1} parent=11 // pred_check
          %p310 = pneg %p140
        $region18: #{tpu_custom_call.1} parent=11 // pred_check_branch
          %312 = sbr.rel (%p310) target = $region20
        $region19: #{tpu_custom_call.1} parent=11 // pred_region
          _
        $region20: #{tpu_custom_call.1} parent=11 // pred_fallthru
          _
        // Predicated region
        $region21: #{tpu_custom_call.1} parent=11 // pred_check
          %p313 = pneg %p161
        $region22: #{tpu_custom_call.1} parent=11 // pred_check_branch
          %315 = sbr.rel (%p313) target = $region24
        $region23: #{tpu_custom_call.1} parent=11 // pred_region
          _
        $region24: #{tpu_custom_call.1} parent=11 // pred_fallthru
          _
        // Predicated region
        $region25: #{tpu_custom_call.1} parent=11 // pred_check
          %p316 = pneg %p182
        $region26: #{tpu_custom_call.1} parent=11 // pred_check_branch
          %318 = sbr.rel (%p316) target = $region28
        $region27: #{tpu_custom_call.1} parent=11 // pred_region
          _
        $region28: #{tpu_custom_call.1} parent=11 // pred_fallthru
          _
        // Predicated region
        $region29: #{tpu_custom_call.1} parent=11 // pred_check
          %p319 = pneg %p203
        $region30: #{tpu_custom_call.1} parent=11 // pred_check_branch
          %321 = sbr.rel (%p319) target = $region32
        $region31: #{tpu_custom_call.1} parent=11 // pred_region
          _
        $region32: #{tpu_custom_call.1} parent=11 // pred_fallthru
          _
        // Predicated region
        $region33: #{tpu_custom_call.1} parent=11 // pred_check
          %p322 = pneg %p224
        $region34: #{tpu_custom_call.1} parent=11 // pred_check_branch
          %324 = sbr.rel (%p322) target = $region36
        $region35: #{tpu_custom_call.1} parent=11 // pred_region
          _
        $region36: #{tpu_custom_call.1} parent=11 // pred_fallthru
          _
        // Predicated region
        $region37: #{tpu_custom_call.1} parent=11 // pred_check
          %p325 = pneg %p245
        $region38: #{tpu_custom_call.1} parent=11 // pred_check_branch
          %327 = sbr.rel (%p325) target = $region40
        $region39: #{tpu_custom_call.1} parent=11 // pred_region
          _
        $region40: #{tpu_custom_call.1} parent=11 // pred_fallthru
          _
        // Predicated region
        $region41: #{tpu_custom_call.1} parent=11 // pred_check
          %p328 = pneg %p266
        $region42: #{tpu_custom_call.1} parent=11 // pred_check_branch
          %330 = sbr.rel (%p328) target = $region44
        $region43: #{tpu_custom_call.1} parent=11 // pred_region
          _
        $region44: #{tpu_custom_call.1} parent=11 // pred_fallthru
          _
      $region12: #{tpu_custom_call.1} parent=5 // pred_fallthru
        _
      %p331 = scmp.lt.s32.totalorder %s20, 2
      // Predicated region
      $region45: #{tpu_custom_call.1} parent=5 // pred_check
        %p332 = pneg %p331
      $region46: #{tpu_custom_call.1} parent=5 // pred_check_branch
        %334 = sbr.rel (%p332) target = $region48
      $region47: #{tpu_custom_call.1} parent=5 // pred_region
        // Predicated region
        $region49: #{tpu_custom_call.1} parent=47 // pred_check
          %p335 = pneg %p40
        $region50: #{tpu_custom_call.1} parent=47 // pred_check_branch
          %337 = sbr.rel (%p335) target = $region52
        $region51: #{tpu_custom_call.1} parent=47 // pred_region
          %s338 = smul.u32 4, %s20
          %p339 = scmp.lt.s32.totalorder %s338, 7
          %s340 = scalar_select %p339, %s338, 7
          %s341 = smul.addr %s340, 8
          %s342 = scalar_lea.vmem %s0, %s341
          %s343 = smul.u32 4, %s20
        $region52: #{tpu_custom_call.1} parent=47 // pred_fallthru
          _
        // Predicated region
        $region53: #{tpu_custom_call.1} parent=47 // pred_check
          %p344 = pneg %p66
        $region54: #{tpu_custom_call.1} parent=47 // pred_check_branch
          %346 = sbr.rel (%p344) target = $region56
        $region55: #{tpu_custom_call.1} parent=47 // pred_region
          %s347 = smul.u32 4, %s20
          %p348 = scmp.lt.s32.totalorder %s347, 7
          %s349 = scalar_select %p348, %s347, 7
          %s350 = smul.addr %s349, 8
          %s351 = scalar_lea.vmem %s1, %s350
          %s352 = smul.u32 4, %s20
        $region56: #{tpu_custom_call.1} parent=47 // pred_fallthru
          _
        // Predicated region
        $region57: #{tpu_custom_call.1} parent=47 // pred_check
          %p353 = pneg %p92
        $region58: #{tpu_custom_call.1} parent=47 // pred_check_branch
          %355 = sbr.rel (%p353) target = $region60
        $region59: #{tpu_custom_call.1} parent=47 // pred_region
          %s356 = smul.u32 4, %s20
          %p357 = scmp.lt.s32.totalorder %s356, 7
          %s358 = scalar_select %p357, %s356, 7
          %s359 = smul.addr %s358, 8
          %s360 = scalar_lea.vmem %s2, %s359
          %s361 = smul.u32 4, %s20
        $region60: #{tpu_custom_call.1} parent=47 // pred_fallthru
          _
      $region48: #{tpu_custom_call.1} parent=5 // pred_fallthru
        _
      %p362 = scmp.le.s32.totalorder 1, %s20
      %p363 = scmp.lt.s32.totalorder %s20, 3
      %p364 = pnand %p362, %p363
      %p365 = pneg %p364
      // Predicated region
      $region61: #{tpu_custom_call.1} parent=5 // pred_check
        _
      $region62: #{tpu_custom_call.1} parent=5 // pred_check_branch
        %367 = sbr.rel (%p364) target = $region64
      $region63: #{tpu_custom_call.1} parent=5 // pred_region
        %s368 = ssub.s32 %s20, 1
        %s369 = smul.u32 4, %s25
        %p370 = scmp.lt.s32.totalorder %s369, 7
        %s371 = scalar_select %p370, %s369, 7
        %s372 = smul.addr %s371, 8
        %s373 = scalar_lea.vmem %s0, %s372
        %p374 = pneg %p46
        %p375 = pneg %p43
        %s376 = smul.u32 4, %s25
        %p377 = scmp.lt.s32.totalorder %s376, 7
        %s378 = scalar_select %p377, %s376, 7
        %s379 = smul.addr %s378, 8
        %s380 = scalar_lea.vmem %s1, %s379
        %p381 = pneg %p72
        %p382 = pneg %p69
        %s383 = smul.u32 4, %s25
        %p384 = scmp.lt.s32.totalorder %s383, 7
        %s385 = scalar_select %p384, %s383, 7
        %s386 = smul.addr %s385, 8
        %s387 = scalar_lea.vmem %s2, %s386
        %p388 = pneg %p98
        %p389 = pneg %p95
        %p390 = pneg %p119
        %p391 = pneg %p116
        %p392 = pneg %p140
        %p393 = pneg %p137
        %p394 = pneg %p161
        %p395 = pneg %p158
        %p396 = pneg %p182
        %p397 = pneg %p179
        %p398 = pneg %p203
        %p399 = pneg %p200
        %p400 = pneg %p224
        %p401 = pneg %p221
        %p402 = pneg %p245
        %p403 = pneg %p242
        %p404 = pneg %p266
        %p405 = pneg %p263
        %p406 = pneg %p292
        %p407 = pneg %p289
        %s408 = sand.u32 %s279, 1
        %s409 = scalar_lea.sflag [#allocation3], %s408
        %s410 = sand.u32 %s279, 1
        %s411 = smul.addr %s410, 8
        %s412 = scalar_lea.vmem [#allocation2], %s411
        %s413 = smul.u32 4, %s25
        %p414 = scmp.lt.s32.totalorder %s413, 7
        %s415 = scalar_select %p414, %s413, 7
        %s416 = smul.addr %s415, 8
        %s417 = scalar_lea.vmem %s0, %s416
        %s418 = smul.u32 4, %s25
        %s419 = smul.u32 4, %s25
        %p420 = scmp.lt.s32.totalorder %s419, 7
        %s421 = scalar_select %p420, %s419, 7
        %s422 = smul.addr %s421, 8
        %s423 = scalar_lea.vmem %s1, %s422
        %s424 = smul.u32 4, %s25
        %s425 = smul.u32 4, %s25
        %p426 = scmp.lt.s32.totalorder %s425, 7
        %s427 = scalar_select %p426, %s425, 7
        %s428 = smul.addr %s427, 8
        %s429 = scalar_lea.vmem %s2, %s428
        %s430 = smul.u32 4, %s25
        %v431 = vld [vmem:[%s417] sm:$0xff]
        %v432 = vld [vmem:[%s417 + $0x8] sm:$0xff]
        %v433 = vld [vmem:[%s417 + $0x10] sm:$0xff]
        %v434 = vld [vmem:[%s417 + $0x18] sm:$0xff]
        %v435 = vld [vmem:[%s3] sm:$0xff]
        %v436 = vld [vmem:[%s3 + $0x8] sm:$0xff]
        %v437 = vld [vmem:[%s3 + $0x10] sm:$0xff]
        %v438 = vld [vmem:[%s3 + $0x18] sm:$0xff]
        %v439 = vld [vmem:[%s3 + $0x20] sm:$0xff]
        %v440 = vld [vmem:[%s3 + $0x28] sm:$0xff]
        %v441 = vld [vmem:[%s3 + $0x30] sm:$0xff]
        %v442 = vld [vmem:[%s3 + $0x38] sm:$0xff]
        %v443 = vld [vmem:[%s3 + $0x40] sm:$0xff]
        %v444 = vld [vmem:[%s3 + $0x48] sm:$0xff]
        %v445 = vld [vmem:[%s3 + $0x50] sm:$0xff]
        %v446 = vld [vmem:[%s3 + $0x58] sm:$0xff]
        %v447 = vld [vmem:[%s3 + $0x60] sm:$0xff]
        %v448 = vld [vmem:[%s3 + $0x68] sm:$0xff]
        %v449 = vld [vmem:[%s3 + $0x70] sm:$0xff]
        %v450 = vld [vmem:[%s3 + $0x78] sm:$0xff]
        %v451 = vld [vmem:[%s4] sm:$0xff]
        %v452 = vld [vmem:[%s4 + $0x8] sm:$0xff]
        %v453 = vld [vmem:[%s4 + $0x10] sm:$0xff]
        %v454 = vld [vmem:[%s4 + $0x18] sm:$0xff]
        %455 = vmatprep.subr.mxu0 0.0
        %456 = vmatpush1.msra.mxu0 %v450
        %457 = vmatprep.subr.mxu0 0.0
        %458 = vmatpush1.msra.mxu0 %v449
        %459 = vmatprep.subr.mxu0 0.0
        %460 = vmatpush1.msra.mxu0 %v448
        %461 = vmatprep.subr.mxu0 0.0
        %462 = vmatpush1.msra.mxu0 %v447
        %463 = vmatprep.subr.mxu0 0.0
        %464 = vmatpush1.msra.mxu0 %v446
        %465 = vmatprep.subr.mxu0 0.0
        %466 = vmatpush1.msra.mxu0 %v445
        %467 = vmatprep.subr.mxu0 0.0
        %468 = vmatpush1.msra.mxu0 %v444
        %469 = vmatprep.subr.mxu0 0.0
        %470 = vmatpush1.msra.mxu0 %v443
        %471 = vmatprep.subr.mxu0 0.0
        %472 = vmatpush1.msra.mxu0 %v442
        %473 = vmatprep.subr.mxu0 0.0
        %474 = vmatpush1.msra.mxu0 %v441
        %475 = vmatprep.subr.mxu0 0.0
        %476 = vmatpush1.msra.mxu0 %v440
        %477 = vmatprep.subr.mxu0 0.0
        %478 = vmatpush1.msra.mxu0 %v439
        %479 = vmatprep.subr.mxu0 0.0
        %480 = vmatpush1.msra.mxu0 %v438
        %481 = vmatprep.subr.mxu0 0.0
        %482 = vmatpush1.msra.mxu0 %v437
        %483 = vmatprep.subr.mxu0 0.0
        %484 = vmatpush1.msra.mxu0 %v436
        %485 = vmatprep.subr.mxu0 0.0
        %486 = vmatpush1.msra.mxu0 %v435
        %487 = vmatprep.subr.mxu0 0.0
        %488 = vmatpush2.msra.mxu0 0.0
        %489 = vmatprep.subr.mxu0 0.0
        %490 = vmatpush2.msra.mxu0 0.0
        %491 = vmatprep.subr.mxu0 0.0
        %492 = vmatpush2.msra.mxu0 0.0
        %493 = vmatprep.subr.mxu0 0.0
        %494 = vmatpush2.msra.mxu0 0.0
        %495 = vmatprep.subr.mxu0 0.0
        %496 = vmatpush2.msra.mxu0 0.0
        %497 = vmatprep.subr.mxu0 0.0
        %498 = vmatpush2.msra.mxu0 0.0
        %499 = vmatprep.subr.mxu0 0.0
        %500 = vmatpush2.msra.mxu0 0.0
        %501 = vmatprep.subr.mxu0 0.0
        %502 = vmatpush2.msra.mxu0 0.0
        %503 = vmatprep.subr.mxu0 0.0
        %504 = vmatpush2.msra.mxu0 0.0
        %505 = vmatprep.subr.mxu0 0.0
        %506 = vmatpush2.msra.mxu0 0.0
        %507 = vmatprep.subr.mxu0 0.0
        %508 = vmatpush2.msra.mxu0 0.0
        %509 = vmatprep.subr.mxu0 0.0
        %510 = vmatpush2.msra.mxu0 0.0
        %511 = vmatprep.subr.mxu0 0.0
        %512 = vmatpush2.msra.mxu0 0.0
        %513 = vmatprep.subr.mxu0 0.0
        %514 = vmatpush2.msra.mxu0 0.0
        %515 = vmatprep.subr.mxu0 0.0
        %516 = vmatpush2.msra.mxu0 0.0
        %517 = vmatprep.subr.mxu0 0.0
        %518 = vmatpush2.msra.mxu0 0.0
        %519 = vmatprep.mubr.f32.mxu0 0.0
        %520 = vmatmul.mubr.f32.gmra.mxu0 %v431
        %v521 = vpop.f32.mrf.mxu0
        %v522 = vadd.f32 %v451, %v521
        %v523 = vpop.f32.mrf.mxu0
        %524 = vmatprep.mubr.f32.mxu0 0.0
        %525 = vmatmul.mubr.f32.gmra.mxu0 %v432
        %v526 = vpop.f32.mrf.mxu0
        %v527 = vadd.f32 %v452, %v526
        %v528 = vpop.f32.mrf.mxu0
        %529 = vmatprep.mubr.f32.mxu0 0.0
        %530 = vmatmul.mubr.f32.gmra.mxu0 %v433
        %v531 = vpop.f32.mrf.mxu0
        %v532 = vadd.f32 %v453, %v531
        %v533 = vpop.f32.mrf.mxu0
        %534 = vmatprep.mubr.f32.mxu0 0.0
        %535 = vmatmul.mubr.f32.gmra.mxu0 %v434
        %v536 = vpop.f32.mrf.mxu0
        %v537 = vadd.f32 %v454, %v536
        %v538 = vpop.f32.mrf.mxu0
        %539 = vdwg.mxu0
        %v540 = vld [vmem:[%s423] sm:$0xff]
        %v541 = vld [vmem:[%s423 + $0x8] sm:$0xff]
        %v542 = vld [vmem:[%s423 + $0x10] sm:$0xff]
        %v543 = vld [vmem:[%s423 + $0x18] sm:$0xff]
        %v544 = vld [vmem:[%s5] sm:$0xff]
        %v545 = vld [vmem:[%s5 + $0x8] sm:$0xff]
        %v546 = vld [vmem:[%s5 + $0x10] sm:$0xff]
        %v547 = vld [vmem:[%s5 + $0x18] sm:$0xff]
        %v548 = vld [vmem:[%s5 + $0x20] sm:$0xff]
        %v549 = vld [vmem:[%s5 + $0x28] sm:$0xff]
        %v550 = vld [vmem:[%s5 + $0x30] sm:$0xff]
        %v551 = vld [vmem:[%s5 + $0x38] sm:$0xff]
        %v552 = vld [vmem:[%s5 + $0x40] sm:$0xff]
        %v553 = vld [vmem:[%s5 + $0x48] sm:$0xff]
        %v554 = vld [vmem:[%s5 + $0x50] sm:$0xff]
        %v555 = vld [vmem:[%s5 + $0x58] sm:$0xff]
        %v556 = vld [vmem:[%s5 + $0x60] sm:$0xff]
        %v557 = vld [vmem:[%s5 + $0x68] sm:$0xff]
        %v558 = vld [vmem:[%s5 + $0x70] sm:$0xff]
        %v559 = vld [vmem:[%s5 + $0x78] sm:$0xff]
        %v560 = vld [vmem:[%s6] sm:$0xff]
        %v561 = vld [vmem:[%s6 + $0x8] sm:$0xff]
        %v562 = vld [vmem:[%s6 + $0x10] sm:$0xff]
        %v563 = vld [vmem:[%s6 + $0x18] sm:$0xff]
        %564 = vmatprep.subr.mxu0 0.0
        %565 = vmatpush1.msra.mxu0 %v559
        %566 = vmatprep.subr.mxu0 0.0
        %567 = vmatpush1.msra.mxu0 %v558
        %568 = vmatprep.subr.mxu0 0.0
        %569 = vmatpush1.msra.mxu0 %v557
        %570 = vmatprep.subr.mxu0 0.0
        %571 = vmatpush1.msra.mxu0 %v556
        %572 = vmatprep.subr.mxu0 0.0
        %573 = vmatpush1.msra.mxu0 %v555
        %574 = vmatprep.subr.mxu0 0.0
        %575 = vmatpush1.msra.mxu0 %v554
        %576 = vmatprep.subr.mxu0 0.0
        %577 = vmatpush1.msra.mxu0 %v553
        %578 = vmatprep.subr.mxu0 0.0
        %579 = vmatpush1.msra.mxu0 %v552
        %580 = vmatprep.subr.mxu0 0.0
        %581 = vmatpush1.msra.mxu0 %v551
        %582 = vmatprep.subr.mxu0 0.0
        %583 = vmatpush1.msra.mxu0 %v550
        %584 = vmatprep.subr.mxu0 0.0
        %585 = vmatpush1.msra.mxu0 %v549
        %586 = vmatprep.subr.mxu0 0.0
        %587 = vmatpush1.msra.mxu0 %v548
        %588 = vmatprep.subr.mxu0 0.0
        %589 = vmatpush1.msra.mxu0 %v547
        %590 = vmatprep.subr.mxu0 0.0
        %591 = vmatpush1.msra.mxu0 %v546
        %592 = vmatprep.subr.mxu0 0.0
        %593 = vmatpush1.msra.mxu0 %v545
        %594 = vmatprep.subr.mxu0 0.0
        %595 = vmatpush1.msra.mxu0 %v544
        %596 = vmatprep.subr.mxu0 0.0
        %597 = vmatpush2.msra.mxu0 0.0
        %598 = vmatprep.subr.mxu0 0.0
        %599 = vmatpush2.msra.mxu0 0.0
        %600 = vmatprep.subr.mxu0 0.0
        %601 = vmatpush2.msra.mxu0 0.0
        %602 = vmatprep.subr.mxu0 0.0
        %603 = vmatpush2.msra.mxu0 0.0
        %604 = vmatprep.subr.mxu0 0.0
        %605 = vmatpush2.msra.mxu0 0.0
        %606 = vmatprep.subr.mxu0 0.0
        %607 = vmatpush2.msra.mxu0 0.0
        %608 = vmatprep.subr.mxu0 0.0
        %609 = vmatpush2.msra.mxu0 0.0
        %610 = vmatprep.subr.mxu0 0.0
        %611 = vmatpush2.msra.mxu0 0.0
        %612 = vmatprep.subr.mxu0 0.0
        %613 = vmatpush2.msra.mxu0 0.0
        %614 = vmatprep.subr.mxu0 0.0
        %615 = vmatpush2.msra.mxu0 0.0
        %616 = vmatprep.subr.mxu0 0.0
        %617 = vmatpush2.msra.mxu0 0.0
        %618 = vmatprep.subr.mxu0 0.0
        %619 = vmatpush2.msra.mxu0 0.0
        %620 = vmatprep.subr.mxu0 0.0
        %621 = vmatpush2.msra.mxu0 0.0
        %622 = vmatprep.subr.mxu0 0.0
        %623 = vmatpush2.msra.mxu0 0.0
        %624 = vmatprep.subr.mxu0 0.0
        %625 = vmatpush2.msra.mxu0 0.0
        %626 = vmatprep.subr.mxu0 0.0
        %627 = vmatpush2.msra.mxu0 0.0
        %628 = vmatprep.mubr.f32.mxu0 0.0
        %629 = vmatmul.mubr.f32.gmra.mxu0 %v540
        %v630 = vpop.f32.mrf.mxu0
        %v631 = vadd.f32 %v560, %v630
        %v632 = vpop.f32.mrf.mxu0
        %633 = vmatprep.mubr.f32.mxu0 0.0
        %634 = vmatmul.mubr.f32.gmra.mxu0 %v541
        %v635 = vpop.f32.mrf.mxu0
        %v636 = vadd.f32 %v561, %v635
        %v637 = vpop.f32.mrf.mxu0
        %638 = vmatprep.mubr.f32.mxu0 0.0
        %639 = vmatmul.mubr.f32.gmra.mxu0 %v542
        %v640 = vpop.f32.mrf.mxu0
        %v641 = vadd.f32 %v562, %v640
        %v642 = vpop.f32.mrf.mxu0
        %643 = vmatprep.mubr.f32.mxu0 0.0
        %644 = vmatmul.mubr.f32.gmra.mxu0 %v543
        %v645 = vpop.f32.mrf.mxu0
        %v646 = vadd.f32 %v563, %v645
        %v647 = vpop.f32.mrf.mxu0
        %648 = vdwg.mxu0
        %v649 = vld [vmem:[%s429] sm:$0xff]
        %v650 = vld [vmem:[%s429 + $0x8] sm:$0xff]
        %v651 = vld [vmem:[%s429 + $0x10] sm:$0xff]
        %v652 = vld [vmem:[%s429 + $0x18] sm:$0xff]
        %v653 = vld [vmem:[%s7] sm:$0xff]
        %v654 = vld [vmem:[%s7 + $0x8] sm:$0xff]
        %v655 = vld [vmem:[%s7 + $0x10] sm:$0xff]
        %v656 = vld [vmem:[%s7 + $0x18] sm:$0xff]
        %v657 = vld [vmem:[%s7 + $0x20] sm:$0xff]
        %v658 = vld [vmem:[%s7 + $0x28] sm:$0xff]
        %v659 = vld [vmem:[%s7 + $0x30] sm:$0xff]
        %v660 = vld [vmem:[%s7 + $0x38] sm:$0xff]
        %v661 = vld [vmem:[%s7 + $0x40] sm:$0xff]
        %v662 = vld [vmem:[%s7 + $0x48] sm:$0xff]
        %v663 = vld [vmem:[%s7 + $0x50] sm:$0xff]
        %v664 = vld [vmem:[%s7 + $0x58] sm:$0xff]
        %v665 = vld [vmem:[%s7 + $0x60] sm:$0xff]
        %v666 = vld [vmem:[%s7 + $0x68] sm:$0xff]
        %v667 = vld [vmem:[%s7 + $0x70] sm:$0xff]
        %v668 = vld [vmem:[%s7 + $0x78] sm:$0xff]
        %v669 = vld [vmem:[%s8] sm:$0xff]
        %v670 = vld [vmem:[%s8 + $0x8] sm:$0xff]
        %v671 = vld [vmem:[%s8 + $0x10] sm:$0xff]
        %v672 = vld [vmem:[%s8 + $0x18] sm:$0xff]
        %673 = vmatprep.subr.mxu0 0.0
        %674 = vmatpush1.msra.mxu0 %v668
        %675 = vmatprep.subr.mxu0 0.0
        %676 = vmatpush1.msra.mxu0 %v667
        %677 = vmatprep.subr.mxu0 0.0
        %678 = vmatpush1.msra.mxu0 %v666
        %679 = vmatprep.subr.mxu0 0.0
        %680 = vmatpush1.msra.mxu0 %v665
        %681 = vmatprep.subr.mxu0 0.0
        %682 = vmatpush1.msra.mxu0 %v664
        %683 = vmatprep.subr.mxu0 0.0
        %684 = vmatpush1.msra.mxu0 %v663
        %685 = vmatprep.subr.mxu0 0.0
        %686 = vmatpush1.msra.mxu0 %v662
        %687 = vmatprep.subr.mxu0 0.0
        %688 = vmatpush1.msra.mxu0 %v661
        %689 = vmatprep.subr.mxu0 0.0
        %690 = vmatpush1.msra.mxu0 %v660
        %691 = vmatprep.subr.mxu0 0.0
        %692 = vmatpush1.msra.mxu0 %v659
        %693 = vmatprep.subr.mxu0 0.0
        %694 = vmatpush1.msra.mxu0 %v658
        %695 = vmatprep.subr.mxu0 0.0
        %696 = vmatpush1.msra.mxu0 %v657
        %697 = vmatprep.subr.mxu0 0.0
        %698 = vmatpush1.msra.mxu0 %v656
        %699 = vmatprep.subr.mxu0 0.0
        %700 = vmatpush1.msra.mxu0 %v655
        %701 = vmatprep.subr.mxu0 0.0
        %702 = vmatpush1.msra.mxu0 %v654
        %703 = vmatprep.subr.mxu0 0.0
        %704 = vmatpush1.msra.mxu0 %v653
        %705 = vmatprep.subr.mxu0 0.0
        %706 = vmatpush2.msra.mxu0 0.0
        %707 = vmatprep.subr.mxu0 0.0
        %708 = vmatpush2.msra.mxu0 0.0
        %709 = vmatprep.subr.mxu0 0.0
        %710 = vmatpush2.msra.mxu0 0.0
        %711 = vmatprep.subr.mxu0 0.0
        %712 = vmatpush2.msra.mxu0 0.0
        %713 = vmatprep.subr.mxu0 0.0
        %714 = vmatpush2.msra.mxu0 0.0
        %715 = vmatprep.subr.mxu0 0.0
        %716 = vmatpush2.msra.mxu0 0.0
        %717 = vmatprep.subr.mxu0 0.0
        %718 = vmatpush2.msra.mxu0 0.0
        %719 = vmatprep.subr.mxu0 0.0
        %720 = vmatpush2.msra.mxu0 0.0
        %721 = vmatprep.subr.mxu0 0.0
        %722 = vmatpush2.msra.mxu0 0.0
        %723 = vmatprep.subr.mxu0 0.0
        %724 = vmatpush2.msra.mxu0 0.0
        %725 = vmatprep.subr.mxu0 0.0
        %726 = vmatpush2.msra.mxu0 0.0
        %727 = vmatprep.subr.mxu0 0.0
        %728 = vmatpush2.msra.mxu0 0.0
        %729 = vmatprep.subr.mxu0 0.0
        %730 = vmatpush2.msra.mxu0 0.0
        %731 = vmatprep.subr.mxu0 0.0
        %732 = vmatpush2.msra.mxu0 0.0
        %733 = vmatprep.subr.mxu0 0.0
        %734 = vmatpush2.msra.mxu0 0.0
        %735 = vmatprep.subr.mxu0 0.0
        %736 = vmatpush2.msra.mxu0 0.0
        %737 = vmatprep.mubr.f32.mxu0 0.0
        %738 = vmatmul.mubr.f32.gmra.mxu0 %v649
        %v739 = vpop.f32.mrf.mxu0
        %v740 = vadd.f32 %v669, %v739
        %v741 = vpop.f32.mrf.mxu0
        %742 = vmatprep.mubr.f32.mxu0 0.0
        %743 = vmatmul.mubr.f32.gmra.mxu0 %v650
        %v744 = vpop.f32.mrf.mxu0
        %v745 = vadd.f32 %v670, %v744
        %v746 = vpop.f32.mrf.mxu0
        %747 = vmatprep.mubr.f32.mxu0 0.0
        %748 = vmatmul.mubr.f32.gmra.mxu0 %v651
        %v749 = vpop.f32.mrf.mxu0
        %v750 = vadd.f32 %v671, %v749
        %v751 = vpop.f32.mrf.mxu0
        %752 = vmatprep.mubr.f32.mxu0 0.0
        %753 = vmatmul.mubr.f32.gmra.mxu0 %v652
        %v754 = vpop.f32.mrf.mxu0
        %v755 = vadd.f32 %v672, %v754
        %v756 = vpop.f32.mrf.mxu0
        %757 = vdwg.mxu0
        %v758 = vld [vmem:[%s10] sm:$0xff]
        %v759 = vld [vmem:[%s10 + $0x8] sm:$0xff]
        %v760 = vld [vmem:[%s10 + $0x10] sm:$0xff]
        %v761 = vld [vmem:[%s10 + $0x18] sm:$0xff]
        %vm762 = vcmask 64512
        %v764 = vsel %vm762, %v522, 0
        %v767 = vsel %vm762, %v527, 0
        %v770 = vsel %vm762, %v532, 0
        %v773 = vsel %vm762, %v537, 0
        %v776 = vsel %vm762, %v631, 0
        %v779 = vsel %vm762, %v636, 0
        %v782 = vsel %vm762, %v641, 0
        %v785 = vsel %vm762, %v646, 0
        %787 = vmatprep.subr.mxu0 0.0
        %788 = vmatpush1.xpose.msra.mxu0 0.0
        %789 = vmatprep.subr.mxu0 0.0
        %790 = vmatpush1.xpose.msra.mxu0 0.0
        %791 = vmatprep.subr.mxu0 0.0
        %792 = vmatpush1.xpose.msra.mxu0 0.0
        %793 = vmatprep.subr.mxu0 0.0
        %794 = vmatpush1.xpose.msra.mxu0 0.0
        %795 = vmatprep.subr.mxu0 0.0
        %796 = vmatpush1.xpose.msra.mxu0 0.0
        %797 = vmatprep.subr.mxu0 0.0
        %798 = vmatpush1.xpose.msra.mxu0 0.0
        %799 = vmatprep.subr.mxu0 0.0
        %800 = vmatpush1.xpose.msra.mxu0 0.0
        %801 = vmatprep.subr.mxu0 0.0
        %802 = vmatpush1.xpose.msra.mxu0 0.0
        %803 = vmatprep.subr.mxu0 0.0
        %804 = vmatpush1.xpose.msra.mxu0 0.0
        %805 = vmatprep.subr.mxu0 0.0
        %806 = vmatpush1.xpose.msra.mxu0 0.0
        %807 = vmatprep.subr.mxu0 0.0
        %808 = vmatpush1.xpose.msra.mxu0 0.0
        %809 = vmatprep.subr.mxu0 0.0
        %810 = vmatpush1.xpose.msra.mxu0 0.0
        %811 = vmatprep.subr.mxu0 0.0
        %812 = vmatpush1.xpose.msra.mxu0 %v785
        %813 = vmatprep.subr.mxu0 0.0
        %814 = vmatpush1.xpose.msra.mxu0 %v782
        %815 = vmatprep.subr.mxu0 0.0
        %816 = vmatpush1.xpose.msra.mxu0 %v779
        %817 = vmatprep.subr.mxu0 0.0
        %818 = vmatpush1.xpose.msra.mxu0 %v776
        %819 = vmatprep.subr.mxu0 0.0
        %820 = vmatpush2.xpose.msra.mxu0 0.0
        %821 = vmatprep.subr.mxu0 0.0
        %822 = vmatpush2.xpose.msra.mxu0 0.0
        %823 = vmatprep.subr.mxu0 0.0
        %824 = vmatpush2.xpose.msra.mxu0 0.0
        %825 = vmatprep.subr.mxu0 0.0
        %826 = vmatpush2.xpose.msra.mxu0 0.0
        %827 = vmatprep.subr.mxu0 0.0
        %828 = vmatpush2.xpose.msra.mxu0 0.0
        %829 = vmatprep.subr.mxu0 0.0
        %830 = vmatpush2.xpose.msra.mxu0 0.0
        %831 = vmatprep.subr.mxu0 0.0
        %832 = vmatpush2.xpose.msra.mxu0 0.0
        %833 = vmatprep.subr.mxu0 0.0
        %834 = vmatpush2.xpose.msra.mxu0 0.0
        %835 = vmatprep.subr.mxu0 0.0
        %836 = vmatpush2.xpose.msra.mxu0 0.0
        %837 = vmatprep.subr.mxu0 0.0
        %838 = vmatpush2.xpose.msra.mxu0 0.0
        %839 = vmatprep.subr.mxu0 0.0
        %840 = vmatpush2.xpose.msra.mxu0 0.0
        %841 = vmatprep.subr.mxu0 0.0
        %842 = vmatpush2.xpose.msra.mxu0 0.0
        %843 = vmatprep.subr.mxu0 0.0
        %844 = vmatpush2.xpose.msra.mxu0 0.0
        %845 = vmatprep.subr.mxu0 0.0
        %846 = vmatpush2.xpose.msra.mxu0 0.0
        %847 = vmatprep.subr.mxu0 0.0
        %848 = vmatpush2.xpose.msra.mxu0 0.0
        %849 = vmatprep.subr.mxu0 0.0
        %850 = vmatpush2.xpose.msra.mxu0 0.0
        %851 = vmatprep.mubr.f32.mxu0 0.0
        %852 = vmatmul.mubr.f32.gmra.mxu0 %v764
        %v853 = vpop.f32.mrf.mxu0
        %v854 = vadd.f32 %v758, %v853
        %v855 = vpop.f32.mrf.mxu0
        %856 = vmatprep.mubr.f32.mxu0 0.0
        %857 = vmatmul.mubr.f32.gmra.mxu0 %v767
        %v858 = vpop.f32.mrf.mxu0
        %v859 = vadd.f32 %v759, %v858
        %v860 = vpop.f32.mrf.mxu0
        %861 = vmatprep.mubr.f32.mxu0 0.0
        %862 = vmatmul.mubr.f32.gmra.mxu0 %v770
        %v863 = vpop.f32.mrf.mxu0
        %v864 = vadd.f32 %v760, %v863
        %v865 = vpop.f32.mrf.mxu0
        %866 = vmatprep.mubr.f32.mxu0 0.0
        %867 = vmatmul.mubr.f32.gmra.mxu0 %v773
        %v868 = vpop.f32.mrf.mxu0
        %v869 = vadd.f32 %v761, %v868
        %v870 = vpop.f32.mrf.mxu0
        %871 = vdwg.mxu0
        %vm872 = vcmask 261120
        %v873 = vsel %vm872, %v854, -inf
        %874 = vmax.xlane.f32.xlu0 %v873
        %v875 = vpop.xlane.xlu0 %874
        %v876 = vsel %vm872, %v859, -inf
        %877 = vmax.xlane.f32.xlu0 %v876
        %v878 = vpop.xlane.xlu0 %877
        %v879 = vsel %vm872, %v864, -inf
        %880 = vmax.xlane.f32.xlu0 %v879
        %v881 = vpop.xlane.xlu0 %880
        %v882 = vsel %vm872, %v869, -inf
        %883 = vmax.xlane.f32.xlu0 %v882
        %v884 = vpop.xlane.xlu0 %883
        %v885 = vsub.f32 %v854, %v875
        %v886 = vsub.f32 %v859, %v878
        %v887 = vsub.f32 %v864, %v881
        %v888 = vsub.f32 %v869, %v884
        %v889 = vmul.f32 %v885, 1.442695
        %v890 = vpow.pop %v889
        %v891 = vmul.f32 %v886, 1.442695
        %v892 = vpow.pop %v891
        %v893 = vmul.f32 %v887, 1.442695
        %v894 = vpow.pop %v893
        %v895 = vmul.f32 %v888, 1.442695
        %v896 = vpow.pop %v895
        %v897 = vsel %vm872, %v890, 0.0
        %898 = vadd.xlane.f32.xlu0 %v897
        %v899 = vpop.xlane.xlu0 %898
        %v900 = vsel %vm872, %v892, 0.0
        %901 = vadd.xlane.f32.xlu0 %v900
        %v902 = vpop.xlane.xlu0 %901
        %v903 = vsel %vm872, %v894, 0.0
        %904 = vadd.xlane.f32.xlu0 %v903
        %v905 = vpop.xlane.xlu0 %904
        %v906 = vsel %vm872, %v896, 0.0
        %907 = vadd.xlane.f32.xlu0 %v906
        %v908 = vpop.xlane.xlu0 %907
        %v909 = vrcp.pop %v899
        %v910 = vrcp.pop %v902
        %v911 = vrcp.pop %v905
        %v912 = vrcp.pop %v908
        %v913 = vmul.f32 %v890, %v909
        %v914 = vmul.f32 %v892, %v910
        %v915 = vmul.f32 %v894, %v911
        %v916 = vmul.f32 %v896, %v912
        %v918 = vsel %vm872, %v913, 0
        %v921 = vsel %vm872, %v914, 0
        %v924 = vsel %vm872, %v915, 0
        %v927 = vsel %vm872, %v916, 0
        %929 = vmatprep.subr.mxu0 0.0
        %930 = vmatpush1.msra.mxu0 0.0
        %931 = vmatprep.subr.mxu0 0.0
        %932 = vmatpush1.msra.mxu0 0.0
        %933 = vmatprep.subr.mxu0 0.0
        %934 = vmatpush1.msra.mxu0 0.0
        %935 = vmatprep.subr.mxu0 0.0
        %936 = vmatpush1.msra.mxu0 0.0
        %937 = vmatprep.subr.mxu0 0.0
        %938 = vmatpush1.msra.mxu0 0.0
        %939 = vmatprep.subr.mxu0 0.0
        %940 = vmatpush1.msra.mxu0 0.0
        %941 = vmatprep.subr.mxu0 0.0
        %942 = vmatpush1.msra.mxu0 0.0
        %943 = vmatprep.subr.mxu0 0.0
        %944 = vmatpush1.msra.mxu0 0.0
        %945 = vmatprep.subr.mxu0 0.0
        %946 = vmatpush1.msra.mxu0 0.0
        %947 = vmatprep.subr.mxu0 0.0
        %948 = vmatpush1.msra.mxu0 0.0
        %949 = vmatprep.subr.mxu0 0.0
        %950 = vmatpush1.msra.mxu0 0.0
        %951 = vmatprep.subr.mxu0 0.0
        %952 = vmatpush1.msra.mxu0 0.0
        %953 = vmatprep.subr.mxu0 0.0
        %954 = vmatpush1.msra.mxu0 %v755
        %955 = vmatprep.subr.mxu0 0.0
        %956 = vmatpush1.msra.mxu0 %v750
        %957 = vmatprep.subr.mxu0 0.0
        %958 = vmatpush1.msra.mxu0 %v745
        %959 = vmatprep.subr.mxu0 0.0
        %960 = vmatpush1.msra.mxu0 %v740
        %961 = vmatprep.subr.mxu0 0.0
        %962 = vmatpush2.msra.mxu0 0.0
        %963 = vmatprep.subr.mxu0 0.0
        %964 = vmatpush2.msra.mxu0 0.0
        %965 = vmatprep.subr.mxu0 0.0
        %966 = vmatpush2.msra.mxu0 0.0
        %967 = vmatprep.subr.mxu0 0.0
        %968 = vmatpush2.msra.mxu0 0.0
        %969 = vmatprep.subr.mxu0 0.0
        %970 = vmatpush2.msra.mxu0 0.0
        %971 = vmatprep.subr.mxu0 0.0
        %972 = vmatpush2.msra.mxu0 0.0
        %973 = vmatprep.subr.mxu0 0.0
        %974 = vmatpush2.msra.mxu0 0.0
        %975 = vmatprep.subr.mxu0 0.0
        %976 = vmatpush2.msra.mxu0 0.0
        %977 = vmatprep.subr.mxu0 0.0
        %978 = vmatpush2.msra.mxu0 0.0
        %979 = vmatprep.subr.mxu0 0.0
        %980 = vmatpush2.msra.mxu0 0.0
        %981 = vmatprep.subr.mxu0 0.0
        %982 = vmatpush2.msra.mxu0 0.0
        %983 = vmatprep.subr.mxu0 0.0
        %984 = vmatpush2.msra.mxu0 0.0
        %985 = vmatprep.subr.mxu0 0.0
        %986 = vmatpush2.msra.mxu0 0.0
        %987 = vmatprep.subr.mxu0 0.0
        %988 = vmatpush2.msra.mxu0 0.0
        %989 = vmatprep.subr.mxu0 0.0
        %990 = vmatpush2.msra.mxu0 0.0
        %991 = vmatprep.subr.mxu0 0.0
        %992 = vmatpush2.msra.mxu0 0.0
        %993 = vmatprep.mubr.f32.mxu0 0.0
        %994 = vmatmul.mubr.f32.gmra.mxu0 %v918
        %v995 = vpop.f32.mrf.mxu0
        %v996 = vadd.f32 0.0, %v995
        %v997 = vpop.f32.mrf.mxu0
        %998 = vmatprep.mubr.f32.mxu0 0.0
        %999 = vmatmul.mubr.f32.gmra.mxu0 %v921
        %v1000 = vpop.f32.mrf.mxu0
        %v1001 = vadd.f32 0.0, %v1000
        %v1002 = vpop.f32.mrf.mxu0
        %1003 = vmatprep.mubr.f32.mxu0 0.0
        %1004 = vmatmul.mubr.f32.gmra.mxu0 %v924
        %v1005 = vpop.f32.mrf.mxu0
        %v1006 = vadd.f32 0.0, %v1005
        %v1007 = vpop.f32.mrf.mxu0
        %1008 = vmatprep.mubr.f32.mxu0 0.0
        %1009 = vmatmul.mubr.f32.gmra.mxu0 %v927
        %v1010 = vpop.f32.mrf.mxu0
        %v1011 = vadd.f32 0.0, %v1010
        %v1012 = vpop.f32.mrf.mxu0
        %1013 = vdwg.mxu0
        %v1014 = vadd.f32 %v996, %v1001
        %v1015 = vadd.f32 %v1014, %v1006
        %v1016 = vadd.f32 %v1015, %v1011
        %v1017 = vld [vmem:[%s9] sm:$0x1]
        %v1019 = vlaneseq
        %v1020 = vshrl.u32 %v1019, 7
        %v1021 = vsub.s32 0, %v1020
        %v1022 = vrot.slane %v1017, %v1021
        %v1024 = vadd.f32 %v1016, %v1022
        %1025 = vst.msk [vmem:[%s412] sm:$0xff] %vm872, %v1024
        %s1026 = sand.u32 %s279, 1
        %s1027 = scalar_lea.sflag [#allocation3], %s1026
        %s1028 = sand.u32 %s279, 1
        %s1029 = smul.addr %s1028, 8
        %s1030 = scalar_lea.vmem [#allocation2], %s1029
        // Predicated region
        $region65: #{tpu_custom_call.1} parent=63 // pred_check
          %p1031 = pneg %p289
        $region66: #{tpu_custom_call.1} parent=63 // pred_check_branch
          %1033 = sbr.rel (%p1031) target = $region68
        $region67: #{tpu_custom_call.1} parent=63 // pred_region
          %s1035 = ssub.s32 128, 128
          %1036 = vsyncadd %s1027, %s1035
          %s1037 = smul.addr %s25, 128
          %s1038 = scalar_lea.hbm %s11, %s1037
          %s1040 = sshll.u32 %s1030, 4
          %s1041 = int_to_ptr.vmem [resolvable:$true] %s1040
          %1043 = dma.vmem_to_hbm [thread:$0]  %s1041, 128, %s1038, %s1027
        $region68: #{tpu_custom_call.1} parent=63 // pred_fallthru
          _
      $region64: #{tpu_custom_call.1} parent=5 // pred_fallthru
        _
      %p1044 = scmp.le.s32.totalorder 2, %s20
      // Predicated region
      $region69: #{tpu_custom_call.1} parent=5 // pred_check
        %p1045 = pneg %p1044
      $region70: #{tpu_custom_call.1} parent=5 // pred_check_branch
        %1047 = sbr.rel (%p1045) target = $region72
      $region71: #{tpu_custom_call.1} parent=5 // pred_region
        %s1048 = ssub.s32 %s20, 2
        // Predicated region
        $region73: #{tpu_custom_call.1} parent=71 // pred_check
          %p1049 = pneg %p295
        $region74: #{tpu_custom_call.1} parent=71 // pred_check_branch
          %1051 = sbr.rel (%p1049) target = $region76
        $region75: #{tpu_custom_call.1} parent=71 // pred_region
          %s1052 = sand.u32 %s280, 1
          %s1053 = scalar_lea.sflag [#allocation3], %s1052
          %s1054 = sand.u32 %s280, 1
          %s1055 = smul.addr %s1054, 8
          %s1056 = scalar_lea.vmem [#allocation2], %s1055
          %1057 = dma.done %s1053, 128
        $region76: #{tpu_custom_call.1} parent=71 // pred_fallthru
          _
      $region72: #{tpu_custom_call.1} parent=5 // pred_fallthru
        _
    $region6: #{tpu_custom_call.1} parent=1 // loop_footer
      %s24 = sadd.s32 1, %s20
    $region7: #{tpu_custom_call.1} parent=1 // loop_footer_branch
      %19 = sbr.rel target = $region3
    $region8: #{tpu_custom_call.1} parent=1 // loop_exit
      _
    %1058 = vsyncpa [#allocation3], 1
    %s1059 = scalar_lea.sflag [#allocation3], 1
    %1060 = vsyncpa %s1059, 1

</llo_original>
